<compile_context>
chip_gen: v7x
topology: tpu7x:2x2x1
jax: 0.10.0
libtpu: 0.0.40
codegen_flags: <defaults>
</compile_context>

<pallas_src>
import jax
import jax.numpy as jnp
from jax.experimental import pallas as pl
from jax.experimental.pallas import tpu as pltpu

MAX_VAL = 1.0e4


def _pick_c_tile(C, per_channel_bytes, target_bytes=4 << 20):
    """Channel tile for the (c_tile, H*W) block.

    The sublane dim of the block (c_tile) must be a multiple of 8 or equal C.
    Targets ~4 MiB tiles (input+output each double-buffered -> ~16 MiB VMEM)
    and at least 2 grid steps when C > 8 so both v7x TensorCores get work.
    """
    if C <= 8:
        return C
    cap = min(C, max(1, target_bytes // max(1, per_channel_bytes)))
    cap = min(cap, (C + 1) // 2)  # keep >= 2 grid steps
    # TODO(synk): if a single channel already exceeds the target (huge images
    # with C > 8) this still uses the minimal legal 8-channel tile; the proper
    # fix is spatial tiling with a 1-row halo.
    return max(8, (cap // 8) * 8)


def dilation(x, kernel, max_val=MAX_VAL):
    """kornia.morphology.dilation on a (C, H, W) image with a 3x3 binary
    structuring element whose center is 1 (as produced by get_random_kernel)."""
    C, H, W = x.shape
    HW = H * W

    # kornia flips the neighborhood: tap (di,dj), k = (di+1)*3 + (dj+1), is
    # active iff kernel[1-di, 1-dj] != 0.
    gates = (jnp.flip(kernel, (0, 1)).reshape(9) != 0).astype(jnp.int32)

    per_channel_bytes = HW * x.dtype.itemsize
    c_tile = _pick_c_tile(C, per_channel_bytes)
    grid = (pl.cdiv(C, c_tile),)

    def kernel_fn(gates_ref, x_ref, out_ref):
        x0 = x_ref[...]                      # (c_tile, H*W), lane-dense
        acc = x0                             # center tap is always active

        # Boundary masks, built once per grid step from a single iota.
        idx = jax.lax.broadcasted_iota(jnp.int32, x0.shape, 1)
        col = idx % W
        valid_up = idx >= W                  # row >= 1      (tap di = -1)
        valid_down = idx < (H - 1) * W       # row <  H - 1  (tap di = +1)
        valid_left = col >= 1                # col >= 1      (tap dj = -1)
        valid_right = col < (W - 1)          # col <  W - 1  (tap dj = +1)

        for di in (-1, 0, 1):
            for dj in (-1, 0, 1):
                if di == 0 and dj == 0:
                    continue
                k = (di + 1) * 3 + (dj + 1)
                # shifted[p] = x0[p + di*W + dj]: per-channel circular roll on
                # the flattened lane axis; wrap positions are masked off below.
                shift = (-(di * W + dj)) % HW
                v = pltpu.roll(x0, shift=shift, axis=1)

                mask = gates_ref[k] != 0     # gate folded into the select
                if di == -1:
                    mask = mask & valid_up
                elif di == 1:
                    mask = mask & valid_down
                if dj == -1:
                    mask = mask & valid_left
                elif dj == 1:
                    mask = mask & valid_right

                acc = jnp.where(mask, jnp.maximum(acc, v), acc)

        out_ref[...] = acc                   # single full-tile store

    cost = pl.CostEstimate(
        flops=9 * C * HW,
        transcendentals=0,
        bytes_accessed=2 * C * HW * x.dtype.itemsize + 9 * 4,
    )

    out = pl.pallas_call(
        kernel_fn,
        out_shape=jax.ShapeDtypeStruct((C, HW), x.dtype),
        grid_spec=pltpu.PrefetchScalarGridSpec(
            num_scalar_prefetch=1,
            grid=grid,
            in_specs=[pl.BlockSpec((c_tile, HW), lambda c, g: (c, 0))],
            out_specs=pl.BlockSpec((c_tile, HW), lambda c, g: (c, 0)),
        ),
        compiler_params=pltpu.CompilerParams(
            dimension_semantics=("parallel",),
            # 48 MiB: raises the default scoped limit on v5e/v6e while staying
            # well inside v7x's 64 MiB physical VMEM.
            vmem_limit_bytes=48 * 1024 * 1024,
        ),
        cost_estimate=cost,
    )(gates, x.reshape(C, HW))

    return out.reshape(C, H, W)


def random_dilation(x, key, p):
    """Forward pass of RandomDilation(p) on a (C, H, W) image (jit-friendly)."""
    k_gate, k_kernel = jax.random.split(key)
    # Device-side stand-in for the Python-level `random.random() > p` gate:
    # no host readback, same distribution.
    gate = jax.random.uniform(k_gate)

    # get_random_kernel(): round(rand(3,3)) with the center forced to 1.
    kern = jnp.round(jax.random.uniform(k_kernel, (3, 3), dtype=jnp.float32))
    kern = kern.at[1, 1].set(1.0)

    return jax.lax.cond(gate > p, lambda v: v, lambda v: dilation(v, kern), x)


def _reference_dilation(x, kernel, max_val=MAX_VAL):
    """Pure-JAX reference of kornia dilation (geodesic border, unfold engine)."""
    C, H, W = x.shape
    neigh = jnp.where(kernel == 0, -max_val, 0.0)
    neigh_f = jnp.flip(neigh, (0, 1))
    xpad = jnp.pad(x, ((0, 0), (1, 1), (1, 1)), constant_values=-max_val)
    windows = jnp.stack(
        [xpad[:, i:i + H, j:j + W] + neigh_f[i, j] for i in range(3) for j in range(3)],
        axis=0,
    )
    return jnp.max(windows, axis=0)


if __name__ == "__main__":
    key = jax.random.PRNGKey(0)
    k_img, k_kernel, k_mod = jax.random.split(key, 3)

    C, H, W = 4, 16, 16
    x = jax.random.uniform(k_img, (C, H, W), dtype=jnp.float32)

    # Deterministic structuring element -> direct correctness check vs reference.
    kern = jnp.round(jax.random.uniform(k_kernel, (3, 3), dtype=jnp.float32))
    kern = kern.at[1, 1].set(1.0)

    out = jax.block_until_ready(dilation(x, kern))
    ref = _reference_dilation(x, kern)
    assert out.shape == (C, H, W) and out.dtype == x.dtype
    assert float(jnp.max(jnp.abs(out - ref))) < 1e-6

    # Exercise the full RandomDilation(p) forward path (p=1.0 -> always dilate).
    out2 = jax.block_until_ready(random_dilation(x, k_mod, p=1.0))
    assert out2.shape == (C, H, W) and out2.dtype == x.dtype
    ref2 = None  # randomness of the structuring element -> no fixed reference

    print("KERNEL_OK")
</pallas_src>

<mosaic_0001>
module attributes {stable_mosaic.version = 11 : i64} {
  func.func @kernel_fn(%arg0: i32, %arg1: memref<9xi32, #tpu.memory_space<smem>>, %arg2: memref<4x256xf32, #tpu.memory_space<vmem>>, %arg3: memref<4x256xf32, #tpu.memory_space<vmem>>) attributes {dimension_semantics = [#tpu.dimension_semantics<parallel>], iteration_bounds = array<i64: 1>, scalar_prefetch = 1 : i64, scratch_operands = 0 : i64, tpu.core_type = #tpu.core_type<tc>, window_params = [{transform_indices = @transform_0, window_bounds = array<i64: 4, 256>}, {transform_indices = @transform_1, window_bounds = array<i64: 4, 256>}]} {
    %c0 = arith.constant 0 : index
    %c0_0 = arith.constant 0 : index
    %0 = vector.load %arg2[%c0, %c0_0] : memref<4x256xf32, #tpu.memory_space<vmem>>, vector<4x256xf32>
    %1 = tpu.iota {dimensions = array<i32: 1>} : vector<4x256xi32>
    %c16_i32 = arith.constant 16 : i32
    %c0_i32 = arith.constant 0 : i32
    %2 = arith.cmpi eq, %c16_i32, %c0_i32 : i32
    %c1_i32 = arith.constant 1 : i32
    %3 = arith.select %2, %c1_i32, %c16_i32 : i32
    %4 = vector.broadcast %3 : i32 to vector<4x256xi32>
    %5 = arith.remsi %1, %4 : vector<4x256xi32>
    %c0_i32_1 = arith.constant 0 : i32
    %6 = vector.broadcast %c0_i32_1 : i32 to vector<4x256xi32>
    %7 = arith.cmpi ne, %5, %6 : vector<4x256xi32>
    %c0_i32_2 = arith.constant 0 : i32
    %8 = vector.broadcast %c0_i32_2 : i32 to vector<4x256xi32>
    %9 = arith.cmpi slt, %5, %8 : vector<4x256xi32>
    %c0_i32_3 = arith.constant 0 : i32
    %10 = arith.cmpi slt, %3, %c0_i32_3 : i32
    %11 = vector.broadcast %10 : i1 to vector<4x256xi1>
    %12 = vector.broadcast %11 : vector<4x256xi1> to vector<4x256xi1>
    %13 = arith.xori %9, %12 : vector<4x256xi1>
    %14 = arith.andi %13, %7 : vector<4x256xi1>
    %15 = vector.broadcast %3 : i32 to vector<4x256xi32>
    %16 = arith.addi %5, %15 : vector<4x256xi32>
    %17 = arith.select %14, %16, %5 : vector<4x256xi1>, vector<4x256xi32>
    %c16_i32_4 = arith.constant 16 : i32
    %18 = vector.broadcast %c16_i32_4 : i32 to vector<4x256xi32>
    %19 = arith.cmpi sge, %1, %18 : vector<4x256xi32>
    %c240_i32 = arith.constant 240 : i32
    %20 = vector.broadcast %c240_i32 : i32 to vector<4x256xi32>
    %21 = arith.cmpi slt, %1, %20 : vector<4x256xi32>
    %c1_i32_5 = arith.constant 1 : i32
    %22 = vector.broadcast %c1_i32_5 : i32 to vector<4x256xi32>
    %23 = arith.cmpi sge, %17, %22 : vector<4x256xi32>
    %c15_i32 = arith.constant 15 : i32
    %24 = vector.broadcast %c15_i32 : i32 to vector<4x256xi32>
    %25 = arith.cmpi slt, %17, %24 : vector<4x256xi32>
    %c17_i32 = arith.constant 17 : i32
    %26 = tpu.dynamic_rotate %0 by %c17_i32 dim 1 : vector<4x256xf32>, i32 -> vector<4x256xf32>
    %c0_6 = arith.constant 0 : index
    %27 = memref.load %arg1[%c0_6] : memref<9xi32, #tpu.memory_space<smem>>
    %c0_i32_7 = arith.constant 0 : i32
    %28 = arith.cmpi ne, %27, %c0_i32_7 : i32
    %29 = vector.broadcast %28 : i1 to vector<4x256xi1>
    %30 = arith.andi %29, %19 : vector<4x256xi1>
    %31 = arith.andi %30, %23 : vector<4x256xi1>
    %32 = arith.maximumf %0, %26 : vector<4x256xf32>
    %33 = arith.select %31, %32, %0 : vector<4x256xi1>, vector<4x256xf32>
    %c16_i32_8 = arith.constant 16 : i32
    %34 = tpu.dynamic_rotate %0 by %c16_i32_8 dim 1 : vector<4x256xf32>, i32 -> vector<4x256xf32>
    %c1 = arith.constant 1 : index
    %35 = memref.load %arg1[%c1] : memref<9xi32, #tpu.memory_space<smem>>
    %c0_i32_9 = arith.constant 0 : i32
    %36 = arith.cmpi ne, %35, %c0_i32_9 : i32
    %37 = vector.broadcast %36 : i1 to vector<4x256xi1>
    %38 = arith.andi %37, %19 : vector<4x256xi1>
    %39 = arith.maximumf %33, %34 : vector<4x256xf32>
    %40 = arith.select %38, %39, %33 : vector<4x256xi1>, vector<4x256xf32>
    %c15_i32_10 = arith.constant 15 : i32
    %41 = tpu.dynamic_rotate %0 by %c15_i32_10 dim 1 : vector<4x256xf32>, i32 -> vector<4x256xf32>
    %c2 = arith.constant 2 : index
    %42 = memref.load %arg1[%c2] : memref<9xi32, #tpu.memory_space<smem>>
    %c0_i32_11 = arith.constant 0 : i32
    %43 = arith.cmpi ne, %42, %c0_i32_11 : i32
    %44 = vector.broadcast %43 : i1 to vector<4x256xi1>
    %45 = arith.andi %44, %19 : vector<4x256xi1>
    %46 = arith.andi %45, %25 : vector<4x256xi1>
    %47 = arith.maximumf %40, %41 : vector<4x256xf32>
    %48 = arith.select %46, %47, %40 : vector<4x256xi1>, vector<4x256xf32>
    %c1_i32_12 = arith.constant 1 : i32
    %49 = tpu.dynamic_rotate %0 by %c1_i32_12 dim 1 : vector<4x256xf32>, i32 -> vector<4x256xf32>
    %c3 = arith.constant 3 : index
    %50 = memref.load %arg1[%c3] : memref<9xi32, #tpu.memory_space<smem>>
    %c0_i32_13 = arith.constant 0 : i32
    %51 = arith.cmpi ne, %50, %c0_i32_13 : i32
    %52 = vector.broadcast %51 : i1 to vector<4x256xi1>
    %53 = arith.andi %52, %23 : vector<4x256xi1>
    %54 = arith.maximumf %48, %49 : vector<4x256xf32>
    %55 = arith.select %53, %54, %48 : vector<4x256xi1>, vector<4x256xf32>
    %c255_i32 = arith.constant 255 : i32
    %56 = tpu.dynamic_rotate %0 by %c255_i32 dim 1 : vector<4x256xf32>, i32 -> vector<4x256xf32>
    %c5 = arith.constant 5 : index
    %57 = memref.load %arg1[%c5] : memref<9xi32, #tpu.memory_space<smem>>
    %c0_i32_14 = arith.constant 0 : i32
    %58 = arith.cmpi ne, %57, %c0_i32_14 : i32
    %59 = vector.broadcast %58 : i1 to vector<4x256xi1>
    %60 = arith.andi %59, %25 : vector<4x256xi1>
    %61 = arith.maximumf %55, %56 : vector<4x256xf32>
    %62 = arith.select %60, %61, %55 : vector<4x256xi1>, vector<4x256xf32>
    %c241_i32 = arith.constant 241 : i32
    %63 = tpu.dynamic_rotate %0 by %c241_i32 dim 1 : vector<4x256xf32>, i32 -> vector<4x256xf32>
    %c6 = arith.constant 6 : index
    %64 = memref.load %arg1[%c6] : memref<9xi32, #tpu.memory_space<smem>>
    %c0_i32_15 = arith.constant 0 : i32
    %65 = arith.cmpi ne, %64, %c0_i32_15 : i32
    %66 = vector.broadcast %65 : i1 to vector<4x256xi1>
    %67 = arith.andi %66, %21 : vector<4x256xi1>
    %68 = arith.andi %67, %23 : vector<4x256xi1>
    %69 = arith.maximumf %62, %63 : vector<4x256xf32>
    %70 = arith.select %68, %69, %62 : vector<4x256xi1>, vector<4x256xf32>
    %c240_i32_16 = arith.constant 240 : i32
    %71 = tpu.dynamic_rotate %0 by %c240_i32_16 dim 1 : vector<4x256xf32>, i32 -> vector<4x256xf32>
    %c7 = arith.constant 7 : index
    %72 = memref.load %arg1[%c7] : memref<9xi32, #tpu.memory_space<smem>>
    %c0_i32_17 = arith.constant 0 : i32
    %73 = arith.cmpi ne, %72, %c0_i32_17 : i32
    %74 = vector.broadcast %73 : i1 to vector<4x256xi1>
    %75 = arith.andi %74, %21 : vector<4x256xi1>
    %76 = arith.maximumf %70, %71 : vector<4x256xf32>
    %77 = arith.select %75, %76, %70 : vector<4x256xi1>, vector<4x256xf32>
    %c239_i32 = arith.constant 239 : i32
    %78 = tpu.dynamic_rotate %0 by %c239_i32 dim 1 : vector<4x256xf32>, i32 -> vector<4x256xf32>
    %c8 = arith.constant 8 : index
    %79 = memref.load %arg1[%c8] : memref<9xi32, #tpu.memory_space<smem>>
    %c0_i32_18 = arith.constant 0 : i32
    %80 = arith.cmpi ne, %79, %c0_i32_18 : i32
    %81 = vector.broadcast %80 : i1 to vector<4x256xi1>
    %82 = arith.andi %81, %21 : vector<4x256xi1>
    %83 = arith.andi %82, %25 : vector<4x256xi1>
    %84 = arith.maximumf %77, %78 : vector<4x256xf32>
    %85 = arith.select %83, %84, %77 : vector<4x256xi1>, vector<4x256xf32>
    %c0_19 = arith.constant 0 : index
    %c0_20 = arith.constant 0 : index
    %86 = vector.load %arg3[%c0_19, %c0_20] : memref<4x256xf32, #tpu.memory_space<vmem>>, vector<4x256xf32>
    tpu.vector_store %arg3[%c0_19, %c0_20], %85 {strides = array<i32>} : memref<4x256xf32, #tpu.memory_space<vmem>>, vector<4x256xf32>,
    return
  }
  func.func @transform_0(%arg0: i32, %arg1: memref<9xi32, #tpu.memory_space<smem>>) -> (i32, i32) {
    %c0_i32 = arith.constant 0 : i32
    %c0_i32_0 = arith.constant 0 : i32
    return %arg0, %c0_i32 : i32, i32
  }
  func.func @transform_1(%arg0: i32, %arg1: memref<9xi32, #tpu.memory_space<smem>>) -> (i32, i32) {
    %c0_i32 = arith.constant 0 : i32
    %c0_i32_0 = arith.constant 0 : i32
    return %arg0, %c0_i32 : i32, i32
  }
}

</mosaic_0001>

<llo_original>
// kernel: tpu_custom_call.1
$region0: #{tpu_custom_call.1}
  #allocation0 [shape = 'u32[]', space=smem, size = 0x4, offset = 0x4, fixed_abs, tag = 'smem constant byte address 0x4 - core index']
  #allocation1 [shape = 'u32[144,128]{1,0:T(1,128)}', space=vmem, size = 0x12000, scoped, tag = 'internal scratch']
  #allocation2 [shape = 's32[1]{0}', space=sflag, size = 0x4, scoped, tag = 'scoped memory for tpu_custom_call.1']
  #allocation3 [shape = 'u8[512]{0}', space=smem, size = 0x200, scoped, tag = 'prefetched SMEM operand 0']
  %s0 = inlined_call_operand.hbm [shape: s32[9], index: 0, kind: input, shape index: {}]
  %s1 = inlined_call_operand.hbm [shape: f32[4,256], index: 1, kind: input, shape index: {}]
  %s2 = inlined_call_operand.hbm [shape: f32[4,256], index: 2, kind: output, shape index: {}]
  %s3 = sld [smem:[#allocation0]]
  $region18: #{tpu_custom_call.1} parent=0
    _
  %s5 = ssub.s32 1, %s3
  %s6 = scalar_select 0, %s5, %s3
  %8 = dma.hbm_to_smem %s0, 16, [#allocation3], [#allocation2]
  %9 = dma.done [#allocation2], 16
  %10 = sfence
  $region1: #{tpu_custom_call.1} parent=0
    #allocation4 [shape = 'u8[4096]{0}', space=vmem, size = 0x1000, scoped, tag = 'input window, operand 1, single buffered']
    #allocation5 [shape = 's32[1]{0}', space=sflag, size = 0x4, scoped, tag = 'scoped memory for tpu_custom_call.1']
    #allocation6 [shape = 's32[1]{0}', space=sflag, size = 0x4, scoped, tag = 'scoped memory for tpu_custom_call.1']
    #allocation7 [shape = 'u8[4096]{0}', space=vmem, size = 0x1000, scoped, tag = 'output window, operand 0, single buffered']
    %11 = vsyncpa [#allocation5], 0
    %12 = vsyncpa [#allocation6], 0
    // Predicated region
    $region2: #{tpu_custom_call.1} parent=1 // pred_check
      _
    $region3: #{tpu_custom_call.1} parent=1 // pred_check_branch
      %14 = sbr.rel (0) target = $region5
    $region4: #{tpu_custom_call.1} parent=1 // pred_region
      %s16 = ssub.s32 128, 128
      %17 = vsyncadd [#allocation5], %s16
      %s19 = sshll.u32 [#allocation4], 4
      %s20 = int_to_ptr.vmem [resolvable:$true] %s19
      %22 = dma.hbm_to_vmem [thread:$0]  %s1, 128, %s20, [#allocation5]
    $region5: #{tpu_custom_call.1} parent=1 // pred_fallthru
      _
    // Predicated region
    $region6: #{tpu_custom_call.1} parent=1 // pred_check
      _
    $region7: #{tpu_custom_call.1} parent=1 // pred_check_branch
      %24 = sbr.rel (0) target = $region9
    $region8: #{tpu_custom_call.1} parent=1 // pred_region
      %25 = dma.done [#allocation5], 128
    $region9: #{tpu_custom_call.1} parent=1 // pred_fallthru
      _
    %v26 = vld [vmem:[#allocation4] sm:$0xff]
    %v27 = vlaneseq
    %v28 = vand.u32 %v27, 127
    %v29 = vadd.s32 %v28, 128
    %vm30 = vcmp.lt.s32.totalorder %v28, 0
    %v31 = vsub.s32 0, %v28
    %v32 = vsel %vm30, %v31, %v28
    %v33 = vshrl.u32 %v32, 4
    %v34 = vand.u32 %v32, 15
    %v35 = vsub.s32 0, %v34
    %v36 = vsel %vm30, %v35, %v34
    %vm37 = vcmp.lt.s32.totalorder %v29, 0
    %v38 = vsub.s32 0, %v29
    %v39 = vsel %vm37, %v38, %v29
    %v40 = vshrl.u32 %v39, 4
    %v41 = vand.u32 %v39, 15
    %v42 = vsub.s32 0, %v41
    %v43 = vsel %vm37, %v42, %v41
    %vm44 = vcmp.ne.s32.totalorder %v36, 0
    %vm45 = vcmp.ne.s32.totalorder %v43, 0
    %vm46 = vcmp.lt.s32.totalorder %v36, 0
    %vm47 = vcmp.lt.s32.totalorder %v43, 0
    %vm48 = vmand %vm46, %vm44
    %vm49 = vmand %vm47, %vm45
    %v50 = vadd.s32 %v36, 16
    %v51 = vadd.s32 %v43, 16
    %v52 = vsel %vm48, %v50, %v36
    %v53 = vsel %vm49, %v51, %v43
    %vm54 = vcmp.ge.s32.totalorder %v28, 16
    %vm55 = vcmp.ge.s32.totalorder %v29, 16
    %vm56 = vcmp.lt.s32.totalorder %v28, 240
    %vm57 = vcmp.lt.s32.totalorder %v29, 240
    %vm58 = vcmp.ge.s32.totalorder %v52, 1
    %vm59 = vcmp.ge.s32.totalorder %v53, 1
    %vm60 = vcmp.lt.s32.totalorder %v52, 15
    %vm61 = vcmp.lt.s32.totalorder %v53, 15
    %v63 = vcombine.high %v26, %v26
    %65 = vrot.lane.b32.xlu0 %v26, 17
    %v66 = vpop.permute.xlu0 %65
    %67 = vrot.lane.b32.xlu0 %v63, 17
    %v68 = vpop.permute.xlu0 %67
    %vm69 = vcmp.lt.s32.totalorder %v28, 17
    %v70 = vsel %vm69, %v66, %v68
    %v71 = vsel %vm69, %v68, %v66
    %s72 = sld [smem:[#allocation3]]
    %p73 = scmp.ne.s32.totalorder %s72, 0
    %s74 = scalar_select %p73, 1, 0
    %v75 = vstv %s74
    %vm76 = vcmp.eq.s32.totalorder %v75, 1
    %vm77 = vmand %vm76, %vm54
    %vm78 = vmand %vm76, %vm55
    %vm79 = vmand %vm77, %vm58
    %vm80 = vmand %vm78, %vm59
    %v83 = vcombine.low %v71, %v70
    %v85 = vmax.f32 %v26, %v83
    %v87 = vcombine.high %v85, %v85
    %v89 = vsel %vm79, %v85, %v26
    %v90 = vsel %vm80, %v87, %v63
    %91 = vrot.lane.b32.xlu0 %v26, 16
    %v92 = vpop.permute.xlu0 %91
    %93 = vrot.lane.b32.xlu0 %v63, 16
    %v94 = vpop.permute.xlu0 %93
    %vm95 = vcmp.lt.s32.totalorder %v28, 16
    %v96 = vsel %vm95, %v92, %v94
    %v97 = vsel %vm95, %v94, %v92
    %s98 = sld [smem:[#allocation3 + $0x1]]
    %p99 = scmp.ne.s32.totalorder %s98, 0
    %s100 = scalar_select %p99, 1, 0
    %v101 = vstv %s100
    %vm102 = vcmp.eq.s32.totalorder %v101, 1
    %vm103 = vmand %vm102, %vm54
    %vm104 = vmand %vm102, %vm55
    %v105 = vmax.f32 %v89, %v97
    %v106 = vmax.f32 %v90, %v96
    %v107 = vsel %vm103, %v105, %v89
    %v108 = vsel %vm104, %v106, %v90
    %109 = vrot.lane.b32.xlu0 %v26, 15
    %v110 = vpop.permute.xlu0 %109
    %111 = vrot.lane.b32.xlu0 %v63, 15
    %v112 = vpop.permute.xlu0 %111
    %vm113 = vcmp.lt.s32.totalorder %v28, 15
    %v114 = vsel %vm113, %v110, %v112
    %v115 = vsel %vm113, %v112, %v110
    %s116 = sld [smem:[#allocation3 + $0x2]]
    %p117 = scmp.ne.s32.totalorder %s116, 0
    %s118 = scalar_select %p117, 1, 0
    %v119 = vstv %s118
    %vm120 = vcmp.eq.s32.totalorder %v119, 1
    %vm121 = vmand %vm120, %vm54
    %vm122 = vmand %vm120, %vm55
    %vm123 = vmand %vm121, %vm60
    %vm124 = vmand %vm122, %vm61
    %v125 = vmax.f32 %v107, %v115
    %v126 = vmax.f32 %v108, %v114
    %v127 = vsel %vm123, %v125, %v107
    %v128 = vsel %vm124, %v126, %v108
    %129 = vrot.lane.b32.xlu0 %v26, 1
    %v130 = vpop.permute.xlu0 %129
    %131 = vrot.lane.b32.xlu0 %v63, 1
    %v132 = vpop.permute.xlu0 %131
    %vm133 = vcmp.lt.s32.totalorder %v28, 1
    %v134 = vsel %vm133, %v130, %v132
    %v135 = vsel %vm133, %v132, %v130
    %s136 = sld [smem:[#allocation3 + $0x3]]
    %p137 = scmp.ne.s32.totalorder %s136, 0
    %s138 = scalar_select %p137, 1, 0
    %v139 = vstv %s138
    %vm140 = vcmp.eq.s32.totalorder %v139, 1
    %vm141 = vmand %vm140, %vm58
    %vm142 = vmand %vm140, %vm59
    %v143 = vmax.f32 %v127, %v135
    %v144 = vmax.f32 %v128, %v134
    %v145 = vsel %vm141, %v143, %v127
    %v146 = vsel %vm142, %v144, %v128
    %147 = vrot.lane.b32.xlu0 %v26, 127
    %v148 = vpop.permute.xlu0 %147
    %149 = vrot.lane.b32.xlu0 %v63, 127
    %v150 = vpop.permute.xlu0 %149
    %vm151 = vcmp.lt.s32.totalorder %v28, 127
    %v152 = vsel %vm151, %v148, %v150
    %v153 = vsel %vm151, %v150, %v148
    %s154 = sld [smem:[#allocation3 + $0x5]]
    %p155 = scmp.ne.s32.totalorder %s154, 0
    %s156 = scalar_select %p155, 1, 0
    %v157 = vstv %s156
    %vm158 = vcmp.eq.s32.totalorder %v157, 1
    %vm159 = vmand %vm158, %vm60
    %vm160 = vmand %vm158, %vm61
    %v161 = vmax.f32 %v145, %v152
    %v162 = vmax.f32 %v146, %v153
    %v163 = vsel %vm159, %v161, %v145
    %v164 = vsel %vm160, %v162, %v146
    %165 = vrot.lane.b32.xlu0 %v26, 113
    %v166 = vpop.permute.xlu0 %165
    %167 = vrot.lane.b32.xlu0 %v63, 113
    %v168 = vpop.permute.xlu0 %167
    %vm169 = vcmp.lt.s32.totalorder %v28, 113
    %v170 = vsel %vm169, %v166, %v168
    %v171 = vsel %vm169, %v168, %v166
    %s172 = sld [smem:[#allocation3 + $0x6]]
    %p173 = scmp.ne.s32.totalorder %s172, 0
    %s174 = scalar_select %p173, 1, 0
    %v175 = vstv %s174
    %vm176 = vcmp.eq.s32.totalorder %v175, 1
    %vm177 = vmand %vm176, %vm56
    %vm178 = vmand %vm176, %vm57
    %vm179 = vmand %vm177, %vm58
    %vm180 = vmand %vm178, %vm59
    %v181 = vmax.f32 %v163, %v170
    %v182 = vmax.f32 %v164, %v171
    %v183 = vsel %vm179, %v181, %v163
    %v184 = vsel %vm180, %v182, %v164
    %185 = vrot.lane.b32.xlu0 %v26, 112
    %v186 = vpop.permute.xlu0 %185
    %187 = vrot.lane.b32.xlu0 %v63, 112
    %v188 = vpop.permute.xlu0 %187
    %vm189 = vcmp.lt.s32.totalorder %v28, 112
    %v190 = vsel %vm189, %v186, %v188
    %v191 = vsel %vm189, %v188, %v186
    %s192 = sld [smem:[#allocation3 + $0x7]]
    %p193 = scmp.ne.s32.totalorder %s192, 0
    %s194 = scalar_select %p193, 1, 0
    %v195 = vstv %s194
    %vm196 = vcmp.eq.s32.totalorder %v195, 1
    %vm197 = vmand %vm196, %vm56
    %vm198 = vmand %vm196, %vm57
    %v199 = vmax.f32 %v183, %v190
    %v200 = vmax.f32 %v184, %v191
    %v201 = vsel %vm197, %v199, %v183
    %v202 = vsel %vm198, %v200, %v184
    %203 = vrot.lane.b32.xlu0 %v26, 111
    %v204 = vpop.permute.xlu0 %203
    %205 = vrot.lane.b32.xlu0 %v63, 111
    %v206 = vpop.permute.xlu0 %205
    %vm207 = vcmp.lt.s32.totalorder %v28, 111
    %v208 = vsel %vm207, %v204, %v206
    %v209 = vsel %vm207, %v206, %v204
    %s210 = sld [smem:[#allocation3 + $0x8]]
    %p211 = scmp.ne.s32.totalorder %s210, 0
    %s212 = scalar_select %p211, 1, 0
    %v213 = vstv %s212
    %vm214 = vcmp.eq.s32.totalorder %v213, 1
    %vm215 = vmand %vm214, %vm56
    %vm216 = vmand %vm214, %vm57
    %vm217 = vmand %vm215, %vm60
    %vm218 = vmand %vm216, %vm61
    %v219 = vmax.f32 %v201, %v208
    %v220 = vmax.f32 %v202, %v209
    %v221 = vsel %vm217, %v219, %v201
    %v222 = vsel %vm218, %v220, %v202
    %v225 = vcombine.low %v221, %v222
    %227 = vst [vmem:[#allocation7] sm:$0xff] %v225
    // Predicated region
    $region10: #{tpu_custom_call.1} parent=1 // pred_check
      _
    $region11: #{tpu_custom_call.1} parent=1 // pred_check_branch
      %229 = sbr.rel (0) target = $region13
    $region12: #{tpu_custom_call.1} parent=1 // pred_region
      %s231 = ssub.s32 128, 128
      %232 = vsyncadd [#allocation6], %s231
      %s234 = sshll.u32 [#allocation7], 4
      %s235 = int_to_ptr.vmem [resolvable:$true] %s234
      %237 = dma.vmem_to_hbm [thread:$0]  %s235, 128, %s2, [#allocation6]
    $region13: #{tpu_custom_call.1} parent=1 // pred_fallthru
      _
    // Predicated region
    $region14: #{tpu_custom_call.1} parent=1 // pred_check
      _
    $region15: #{tpu_custom_call.1} parent=1 // pred_check_branch
      %239 = sbr.rel (0) target = $region17
    $region16: #{tpu_custom_call.1} parent=1 // pred_region
      %240 = dma.done [#allocation6], 128
    $region17: #{tpu_custom_call.1} parent=1 // pred_fallthru
      _
    %241 = vsyncpa [#allocation5], 1
    %242 = vsyncpa [#allocation6], 1

</llo_original>
